<compile_context>
chip_gen: v6e
topology: v6e:2x2x1
jax: 0.10.0
libtpu: 0.0.40
codegen_flags: <defaults>
</compile_context>

<pallas_src>
import functools

import numpy as np
import jax
import jax.numpy as jnp
from jax.experimental import pallas as pl
from jax.experimental.pallas import tpu as pltpu


def _round_up(v, m):
    return ((v + m - 1) // m) * m


# ----------------------------- kernels --------------------------------------


def _gemm_kernel(x_ref, w_ref, o_ref):
    # Whole K in one block: o = x_tile @ w_fold (f32 accumulation on the MXU).
    o_ref[...] = jnp.dot(
        x_ref[...], w_ref[...], preferred_element_type=jnp.float32
    ).astype(o_ref.dtype)


def _gemm_kacc_kernel(x_ref, w_ref, o_ref, acc_ref):
    # K-tiled variant: accumulate partial products in an f32 VMEM scratch.
    @pl.when(pl.program_id(1) == 0)
    def _():
        acc_ref[...] = jnp.zeros_like(acc_ref)

    acc_ref[...] += jnp.dot(
        x_ref[...], w_ref[...], preferred_element_type=jnp.float32
    )

    @pl.when(pl.program_id(1) == pl.num_programs(1) - 1)
    def _():
        o_ref[...] = acc_ref[...].astype(o_ref.dtype)


# --------------------------- tile selection ----------------------------------

# Conservative budget: fits v5e's 16 MiB default scoped VMEM and leaves ample
# headroom on v6e (32/128 MiB) and v7x (32/64 MiB per TensorCore).
_VMEM_BUDGET_BYTES = 12 * 1024 * 1024


def _choose_tiles(n, k, nc, in_itemsize, out_itemsize, tm_req, tk_req):
    # --- K tile: single block unless in_features is large (or overridden). ---
    if tk_req is not None:
        tk = tk_req
    elif k <= 4096:
        tk = k
    else:
        tk = 2048
    if tk != k:
        tk = _round_up(tk, 128)  # x-block last dim must be lane aligned

    # --- Row tile: multiple of 8, clamped so tiny N is not over-tiled. ---
    tm = max(8, min(_round_up(tm_req, 8), _round_up(n, 8)))

    def vmem_bytes(tm_):
        return (2 * tm_ * tk * in_itemsize      # double-buffered x tiles
                + 2 * tk * nc * in_itemsize     # double-buffered weight tiles
                + 2 * tm_ * nc * out_itemsize   # double-buffered output tiles
                + tm_ * nc * 4)                 # f32 accumulator scratch

    while tm > 8 and vmem_bytes(tm) > _VMEM_BUDGET_BYTES:
        tm = max(8, _round_up(tm // 2, 8))
    return tm, tk


# ------------------------------ forward --------------------------------------


@functools.partial(
    jax.jit, static_argnames=("tm", "tk", "compute_dtype", "out_dtype")
)
def asge_forward(x, weight, adjacency, *, tm=512, tk=None,
                 compute_dtype=jnp.bfloat16, out_dtype=jnp.float32):
    """ASGE / GraphConvolution forward: (x @ W) @ A computed as x @ (W @ A)."""
    n, in_features = x.shape
    in_features_w, num_classes = weight.shape
    assert in_features_w == in_features
    assert adjacency.shape == (num_classes, num_classes)

    # Fold the two matmuls once (KB-scale) with plain XLA under the same jit;
    # the hot Pallas kernel is then a single row-tiled GEMM over N.
    w_fold = jnp.dot(
        weight.astype(jnp.float32), adjacency.astype(jnp.float32),
        preferred_element_type=jnp.float32,
    ).astype(compute_dtype)
    x = x.astype(compute_dtype)

    in_itemsize = jnp.dtype(compute_dtype).itemsize
    out_itemsize = jnp.dtype(out_dtype).itemsize
    tm, tk = _choose_tiles(
        n, in_features, num_classes, in_itemsize, out_itemsize, tm, tk
    )

    # Zero-pad K only in the (rare) K-tiled, non-divisible case; zeros are
    # exact no-ops in the accumulation.  The row dim is never padded.
    k_pad = _round_up(in_features, tk)
    if k_pad != in_features:
        x = jnp.pad(x, ((0, 0), (0, k_pad - in_features)))
        w_fold = jnp.pad(w_fold, ((0, k_pad - in_features), (0, 0)))

    rows = pl.cdiv(n, tm)
    kb = k_pad // tk

    if kb == 1:
        out = pl.pallas_call(
            _gemm_kernel,
            out_shape=jax.ShapeDtypeStruct((n, num_classes), out_dtype),
            grid_spec=pltpu.PrefetchScalarGridSpec(
                num_scalar_prefetch=0,
                grid=(rows,),
                in_specs=[
                    # Streamed row tile of x.
                    pl.BlockSpec((tm, tk), lambda i: (i, 0)),
                    # Folded weight, resident across all row tiles.
                    pl.BlockSpec((tk, num_classes), lambda i: (0, 0)),
                ],
                out_specs=pl.BlockSpec((tm, num_classes), lambda i: (i, 0)),
            ),
            compiler_params=pltpu.CompilerParams(
                dimension_semantics=("parallel",),
            ),
        )(x, w_fold)
    else:
        out = pl.pallas_call(
            _gemm_kacc_kernel,
            out_shape=jax.ShapeDtypeStruct((n, num_classes), out_dtype),
            grid_spec=pltpu.PrefetchScalarGridSpec(
                num_scalar_prefetch=0,
                grid=(rows, kb),
                in_specs=[
                    pl.BlockSpec((tm, tk), lambda i, j: (i, j)),
                    pl.BlockSpec((tk, num_classes), lambda i, j: (j, 0)),
                ],
                out_specs=pl.BlockSpec((tm, num_classes), lambda i, j: (i, 0)),
                scratch_shapes=[pltpu.VMEM((tm, num_classes), jnp.float32)],
            ),
            compiler_params=pltpu.CompilerParams(
                dimension_semantics=("parallel", "arbitrary"),
            ),
        )(x, w_fold)

    return out


# ------------------------------ test setup -----------------------------------


def gen_A_synthetic(num_classes, t, key):
    """Deterministic synthetic stand-in for gen_A (no pickle file)."""
    # TODO(synk): original gen_A loads co-occurrence stats from a pickle file;
    # replaced with an in-script synthetic adjacency built the same way.
    k_adj, k_nums = jax.random.split(key)
    _adj = np.asarray(
        jax.random.uniform(k_adj, (num_classes, num_classes), dtype=jnp.float32)
    ).astype(np.float64)
    _nums = np.asarray(
        jax.random.randint(k_nums, (num_classes,), 1, 10)
    ).astype(np.float64)
    _nums = _nums[:, np.newaxis]
    _adj = _adj / _nums
    _adj[_adj < t] = 0
    _adj[_adj >= t] = 1
    _adj = _adj * 0.25 / (_adj.sum(0, keepdims=True) + 1e-06)
    _adj = _adj + np.identity(num_classes, np.int64)
    return jnp.asarray(_adj, dtype=jnp.float32)


def xavier_uniform(key, in_features, out_features):
    limit = float(np.sqrt(6.0 / (in_features + out_features)))
    return jax.random.uniform(
        key, (in_features, out_features), dtype=jnp.float32,
        minval=-limit, maxval=limit,
    )


if __name__ == "__main__":
    # Small shapes consistent with the module: N graph nodes == num_classes.
    num_classes = 16
    in_features = 32
    n_nodes = num_classes

    key = jax.random.PRNGKey(0)
    k_x, k_w, k_a = jax.random.split(key, 3)

    x = jax.random.normal(k_x, (n_nodes, in_features), dtype=jnp.float32)
    weight = xavier_uniform(k_w, in_features, num_classes)
    adjacency = gen_A_synthetic(num_classes, 0.4, k_a)

    # Reference in plain JAX (unfused order; fold reorders FP sums slightly).
    ref = (x @ weight) @ adjacency

    # Default path: bf16 MXU inputs, f32 accumulation, single K block.
    out = jax.block_until_ready(asge_forward(x, weight, adjacency))
    np.testing.assert_allclose(np.asarray(out), np.asarray(ref),
                               rtol=3e-2, atol=3e-2)

    # f32 compute path for a tight numerical check.
    out_f32 = jax.block_until_ready(
        asge_forward(x, weight, adjacency, compute_dtype=jnp.float32))
    np.testing.assert_allclose(np.asarray(out_f32), np.asarray(ref),
                               rtol=1e-4, atol=1e-4)

    # Exercise the multi-row-tile + K-tiled accumulator path (still tiny).
    in_features_big = 256
    k_x2, k_w2 = jax.random.split(jax.random.PRNGKey(1))
    x2 = jax.random.normal(k_x2, (n_nodes, in_features_big), dtype=jnp.float32)
    w2 = xavier_uniform(k_w2, in_features_big, num_classes)
    ref2 = (x2 @ w2) @ adjacency
    out2 = jax.block_until_ready(
        asge_forward(x2, w2, adjacency, tm=8, tk=128,
                     compute_dtype=jnp.float32))
    np.testing.assert_allclose(np.asarray(out2), np.asarray(ref2),
                               rtol=1e-4, atol=1e-4)

    print("KERNEL_OK")
</pallas_src>

<mosaic_0001>
module attributes {stable_mosaic.version = 11 : i64} {
  func.func @_gemm_kernel(%arg0: i32, %arg1: memref<16x32xbf16, #tpu.memory_space<vmem>>, %arg2: memref<32x16xbf16, #tpu.memory_space<vmem>>, %arg3: memref<16x16xf32, #tpu.memory_space<vmem>>) attributes {dimension_semantics = [#tpu.dimension_semantics<parallel>], iteration_bounds = array<i64: 1>, scalar_prefetch = 0 : i64, scratch_operands = 0 : i64, tpu.core_type = #tpu.core_type<tc>, window_params = [{transform_indices = @transform_0, window_bounds = array<i64: 16, 32>}, {pipeline_mode = #tpu.pipeline_mode<synchronous>, transform_indices = @transform_1, window_bounds = array<i64: 32, 16>}, {transform_indices = @transform_2, window_bounds = array<i64: 16, 16>}]} {
    %c0 = arith.constant 0 : index
    %c0_0 = arith.constant 0 : index
    %0 = vector.load %arg1[%c0, %c0_0] : memref<16x32xbf16, #tpu.memory_space<vmem>>, vector<16x32xbf16>
    %c0_1 = arith.constant 0 : index
    %c0_2 = arith.constant 0 : index
    %1 = vector.load %arg2[%c0_1, %c0_2] : memref<32x16xbf16, #tpu.memory_space<vmem>>, vector<32x16xbf16>
    %cst = arith.constant dense<0.000000e+00> : vector<16x16xf32>
    %2 = tpu.matmul %0, %1, %cst {dimension_numbers = #tpu.dot_dimension_numbers<[1], [0], [0], [1], [0, 0, 1, 1], [], []>} : vector<16x32xbf16>, vector<32x16xbf16>, vector<16x16xf32> -> vector<16x16xf32>
    %c0_3 = arith.constant 0 : index
    %c0_4 = arith.constant 0 : index
    %3 = vector.load %arg3[%c0_3, %c0_4] : memref<16x16xf32, #tpu.memory_space<vmem>>, vector<16x16xf32>
    tpu.vector_store %arg3[%c0_3, %c0_4], %2 {strides = array<i32>} : memref<16x16xf32, #tpu.memory_space<vmem>>, vector<16x16xf32>,
    return
  }
  func.func @transform_0(%arg0: i32) -> (i32, i32) {
    %c0_i32 = arith.constant 0 : i32
    %c0_i32_0 = arith.constant 0 : i32
    return %arg0, %c0_i32 : i32, i32
  }
  func.func @transform_1(%arg0: i32) -> (i32, i32) {
    %c0_i32 = arith.constant 0 : i32
    %c0_i32_0 = arith.constant 0 : i32
    %c0_i32_1 = arith.constant 0 : i32
    return %c0_i32, %c0_i32_0 : i32, i32
  }
  func.func @transform_2(%arg0: i32) -> (i32, i32) {
    %c0_i32 = arith.constant 0 : i32
    %c0_i32_0 = arith.constant 0 : i32
    return %arg0, %c0_i32 : i32, i32
  }
}

</mosaic_0001>

<llo_original>
// kernel: asge_forward.1
$region0: #{asge_forward.1}
  #allocation0 [shape = 'u32[]', space=smem, size = 0x4, offset = 0x4, fixed_abs, tag = 'smem constant byte address 0x4 - core index']
  #allocation1 [shape = 'u32[144,128]{1,0:T(1,128)}', space=vmem, size = 0x12000, scoped, tag = 'internal scratch']
  %s0 = inlined_call_operand.vmem [shape: bf16[16,32], index: 0, kind: input, shape index: {}]
  %s1 = inlined_call_operand.vmem [shape: bf16[32,16], index: 1, kind: input, shape index: {}]
  %s2 = inlined_call_operand.hbm [shape: f32[16,16], index: 2, kind: output, shape index: {}]
  %s3 = sld [smem:[#allocation0]]
  $region18: #{asge_forward.1} parent=0
    _
  %s5 = ssub.s32 1, %s3
  %s6 = scalar_select 0, %s5, %s3
  $region1: #{asge_forward.1} parent=0
    #allocation2 [shape = 'u8[8192]{0}', space=vmem, size = 0x2000, scoped, tag = 'output window, operand 0, single buffered']
    #allocation3 [shape = 's32[1]{0}', space=sflag, size = 0x4, scoped, tag = 'scoped memory for asge_forward.1']
    %7 = vsyncpa [#allocation3], 0
    // Predicated region
    $region2: #{asge_forward.1} parent=1 // pred_check
      _
    $region3: #{asge_forward.1} parent=1 // pred_check_branch
      %9 = sbr.rel (0) target = $region5
    $region4: #{asge_forward.1} parent=1 // pred_region
      _
    $region5: #{asge_forward.1} parent=1 // pred_fallthru
      _
    // Predicated region
    $region6: #{asge_forward.1} parent=1 // pred_check
      _
    $region7: #{asge_forward.1} parent=1 // pred_check_branch
      %11 = sbr.rel (0) target = $region9
    $region8: #{asge_forward.1} parent=1 // pred_region
      _
    $region9: #{asge_forward.1} parent=1 // pred_fallthru
      _
    %v13 = vld [vmem:[%s0] sm:$0xf]
    %v14 = vld [vmem:[%s0 + $0x4] sm:$0xf]
    %v15 = vld [vmem:[%s1] sm:$0xf]
    %v16 = vld [vmem:[%s1 + $0x4] sm:$0xf]
    %v17 = vld [vmem:[%s1 + $0x8] sm:$0xf]
    %v18 = vld [vmem:[%s1 + $0xc] sm:$0xf]
    %v21 = vunpack.c.l.b16 %v13
    %v22 = vunpack.c.l.b16 %v14
    %v23 = vpack.c.b16 %v22, %v21
    %v28 = vunpack.c.l.b16 %v15
    %v29 = vunpack.c.l.b16 %v16
    %v30 = vunpack.c.l.b16 %v17
    %v31 = vunpack.c.l.b16 %v18
    %v32 = vpack.c.b16 %v29, %v28
    %v33 = vpack.c.b16 %v31, %v30
    %vm36 = vcmask 261120
    %v38 = vsel %vm36, %v23, 0
    %40 = vmatprep.subr.bf16.mxu0 0
    %41 = vmatpush1.bf16.msra.mxu0 0
    %42 = vmatprep.subr.bf16.mxu0 0
    %43 = vmatpush1.bf16.msra.mxu0 0
    %44 = vmatprep.subr.bf16.mxu0 0
    %45 = vmatpush1.bf16.msra.mxu0 0
    %46 = vmatprep.subr.bf16.mxu0 0
    %47 = vmatpush1.bf16.msra.mxu0 0
    %48 = vmatprep.subr.bf16.mxu0 0
    %49 = vmatpush1.bf16.msra.mxu0 0
    %50 = vmatprep.subr.bf16.mxu0 0
    %51 = vmatpush1.bf16.msra.mxu0 0
    %52 = vmatprep.subr.bf16.mxu0 0
    %53 = vmatpush1.bf16.msra.mxu0 %v33
    %54 = vmatprep.subr.bf16.mxu0 0
    %55 = vmatpush1.bf16.msra.mxu0 %v32
    %56 = vmatprep.subr.bf16.mxu0 0
    %57 = vmatpush2.bf16.msra.mxu0 0
    %58 = vmatprep.subr.bf16.mxu0 0
    %59 = vmatpush2.bf16.msra.mxu0 0
    %60 = vmatprep.subr.bf16.mxu0 0
    %61 = vmatpush2.bf16.msra.mxu0 0
    %62 = vmatprep.subr.bf16.mxu0 0
    %63 = vmatpush2.bf16.msra.mxu0 0
    %64 = vmatprep.subr.bf16.mxu0 0
    %65 = vmatpush2.bf16.msra.mxu0 0
    %66 = vmatprep.subr.bf16.mxu0 0
    %67 = vmatpush2.bf16.msra.mxu0 0
    %68 = vmatprep.subr.bf16.mxu0 0
    %69 = vmatpush2.bf16.msra.mxu0 0
    %70 = vmatprep.subr.bf16.mxu0 0
    %71 = vmatpush2.bf16.msra.mxu0 0
    %72 = vmatprep.mubr.bf16.mxu0 0
    %73 = vmatmul.mubr.bf16.gmra.mxu0 %v38
    %v74 = vpop.f32.mrf.mxu0
    %v75 = vadd.f32 0.0, %v74
    %v76 = vpop.f32.mrf.mxu0
    %v77 = vpop.f32.mrf.mxu0
    %v78 = vadd.f32 0.0, %v77
    %v79 = vpop.f32.mrf.mxu0
    %80 = vdwg.mxu0
    %vm81 = vcmask 130048
    %82 = vst.msk [vmem:[#allocation2] sm:$0xff] %vm81, %v75
    %83 = vst.msk [vmem:[#allocation2 + $0x8] sm:$0xff] %vm81, %v78
    // Predicated region
    $region10: #{asge_forward.1} parent=1 // pred_check
      _
    $region11: #{asge_forward.1} parent=1 // pred_check_branch
      %85 = sbr.rel (0) target = $region13
    $region12: #{asge_forward.1} parent=1 // pred_region
      %s87 = ssub.s32 256, 256
      %88 = vsyncadd [#allocation3], %s87
      %s89 = sshll.u32 [#allocation2], 4
      %s90 = int_to_ptr.vmem [resolvable:$true] %s89
      %95 = dma.vmem_to_hbm [thread:$0]  %s90, 256, %s2, [#allocation3], 128, 128, 8
    $region13: #{asge_forward.1} parent=1 // pred_fallthru
      _
    // Predicated region
    $region14: #{asge_forward.1} parent=1 // pred_check
      _
    $region15: #{asge_forward.1} parent=1 // pred_check_branch
      %97 = sbr.rel (0) target = $region17
    $region16: #{asge_forward.1} parent=1 // pred_region
      %98 = dma.done [#allocation3], 256
    $region17: #{asge_forward.1} parent=1 // pred_fallthru
      _
    %99 = vsyncpa [#allocation3], 1

</llo_original>
